<compile_context>
chip_gen: v6e
topology: v6e:2x2x1
jax: 0.10.0
libtpu: 0.0.40
codegen_flags: <defaults>
</compile_context>

<pallas_src>
import jax
import jax.numpy as jnp
from jax.experimental import pallas as pl
from jax.experimental.pallas import tpu as pltpu


def _add_kernel(x_ref, o_ref):
    # Single load per tile, pure VPU elementwise.
    v = x_ref[...]
    o_ref[...] = v + v


def _sublane_for_dtype(dtype):
    itemsize = jnp.dtype(dtype).itemsize
    if itemsize >= 4:
        return 8
    if itemsize == 2:
        return 16
    # TODO(synk): packed sub-byte dtypes (int4/fp4) / bool would need explicit handling.
    return 32


def _target_tile_bytes():
    """Generation-aware tile size; 4x double-buffers must fit the scoped-VMEM default."""
    try:
        kind = jax.devices()[0].device_kind.lower()
    except Exception:
        return 2 << 20
    if "v7" in kind or "7x" in kind:
        return 6 << 20   # v7x: 3.2 TB/s HBM -> amortize ~0.35us/step; 4x6=24MiB < 32MiB default
    if "v6" in kind:
        return 4 << 20   # v6e: ~86% of roofline; 4x4=16MiB < 32MiB default
    return 2 << 20       # v5e & older/unknown: 4x2=8MiB < 16MiB default


def _round_up(a, b):
    return ((a + b - 1) // b) * b


def _run_2d(x2d, target_bytes):
    """x + x over a 2D view, tiled along rows, full-extent last dim."""
    rows, width = x2d.shape
    dtype = x2d.dtype
    itemsize = jnp.dtype(dtype).itemsize
    sub = _sublane_for_dtype(dtype)
    vmem_width = _round_up(width, 128)  # lane padding of the VMEM block

    if rows <= sub:
        tile_rows = rows  # full-extent block is always a legal shape
    else:
        # Tile sized by VMEM footprint (lane-padded), multiple of the sublane pack.
        tile_rows = max(sub, (target_bytes // (vmem_width * itemsize)) // sub * sub)
        # Guarantee >= 2 grid steps so both v7x TensorCores get work.
        half = max(sub, ((rows + 1) // 2) // sub * sub)
        tile_rows = min(tile_rows, half, rows)

    grid = (pl.cdiv(rows, tile_rows),)
    n = rows * width

    return pl.pallas_call(
        _add_kernel,
        out_shape=jax.ShapeDtypeStruct((rows, width), dtype),
        grid_spec=pltpu.PrefetchScalarGridSpec(
            num_scalar_prefetch=0,
            grid=grid,
            in_specs=[pl.BlockSpec((tile_rows, width), lambda i: (i, 0))],
            out_specs=pl.BlockSpec((tile_rows, width), lambda i: (i, 0)),
        ),
        compiler_params=pltpu.CompilerParams(
            dimension_semantics=("parallel",),
        ),
        cost_estimate=pl.CostEstimate(
            flops=n,
            transcendentals=0,
            bytes_accessed=2 * n * itemsize,
        ),
    )(x2d)


def add_self(x):
    """Compute x + x with a Pallas TPU kernel. Works for any shape/dtype."""
    orig_shape = x.shape
    n = x.size
    if n == 0:
        return x

    dtype = x.dtype
    itemsize = jnp.dtype(dtype).itemsize
    sub = _sublane_for_dtype(dtype)
    target_bytes = _target_tile_bytes()

    if n % 128 == 0:
        # Aligned path: flatten to a lane-dense (rows, width) view.  Unmasked
        # 128-multiple-lane stores, no padding/slicing, 2 HBM passes total.
        # (Width choice beyond being a 128-multiple is perf-neutral: the flat
        # view is contiguous, so every tile is one contiguous DMA.)
        width = 128
        for w in (2048, 1024, 512, 256):
            if n % w == 0:
                width = w
                break
        out = _run_2d(x.reshape(n // width, width), target_bytes)
        return out.reshape(orig_shape)

    # Ragged path (n not a multiple of 128): collapse leading dims, keep the
    # natural last dim, and tile rows with full-extent last-dim blocks (always
    # a legal block shape).  The ragged final row-block is masked by Pallas —
    # no jnp.pad / out[:n] round trips through HBM.
    last = orig_shape[-1] if x.ndim >= 1 else 1
    rows = n // last
    row_vmem_bytes = _round_up(last, 128) * itemsize

    if 4 * sub * row_vmem_bytes > (12 << 20):
        # TODO(synk): pathological "single row block too big for VMEM" corner;
        # fall back to the padded flatten path (extra HBM copies, but correct).
        flat = jnp.pad(x.reshape(-1), (0, (-n) % 128))
        out = _run_2d(flat.reshape(-1, 128), target_bytes)
        return out.reshape(-1)[:n].reshape(orig_shape)

    out = _run_2d(x.reshape(rows, last), target_bytes)
    return out.reshape(orig_shape)


if __name__ == "__main__":
    key = jax.random.PRNGKey(0)

    # Small NCHW input consistent with the test: batch=2, ch=4, 16x16.
    x = jax.random.normal(key, (2, 4, 16, 16), dtype=jnp.float32)
    y = add_self(x)
    jax.block_until_ready(y)
    assert y.shape == x.shape
    assert jnp.allclose(y, x + x, atol=0.0, rtol=0.0), "mismatch vs reference"

    # Exercise the ragged (non-128-divisible) path: no pad/slice round trips.
    x2 = jax.random.normal(jax.random.PRNGKey(1), (3, 5, 7, 11), dtype=jnp.float32)
    y2 = add_self(x2)
    jax.block_until_ready(y2)
    assert y2.shape == x2.shape
    assert jnp.allclose(y2, x2 + x2, atol=0.0, rtol=0.0), "mismatch vs reference (ragged)"

    print("KERNEL_OK")
</pallas_src>

<mosaic_0001>
module attributes {stable_mosaic.version = 11 : i64} {
  func.func @_add_kernel(%arg0: i32, %arg1: memref<1x2048xf32, #tpu.memory_space<vmem>>, %arg2: memref<1x2048xf32, #tpu.memory_space<vmem>>) attributes {dimension_semantics = [#tpu.dimension_semantics<parallel>], iteration_bounds = array<i64: 1>, scalar_prefetch = 0 : i64, scratch_operands = 0 : i64, tpu.core_type = #tpu.core_type<tc>, window_params = [{transform_indices = @transform_0, window_bounds = array<i64: 1, 2048>}, {transform_indices = @transform_1, window_bounds = array<i64: 1, 2048>}]} {
    %c0 = arith.constant 0 : index
    %c0_0 = arith.constant 0 : index
    %0 = vector.load %arg1[%c0, %c0_0] : memref<1x2048xf32, #tpu.memory_space<vmem>>, vector<1x2048xf32>
    %1 = arith.addf %0, %0 : vector<1x2048xf32>
    %c0_1 = arith.constant 0 : index
    %c0_2 = arith.constant 0 : index
    %2 = vector.load %arg2[%c0_1, %c0_2] : memref<1x2048xf32, #tpu.memory_space<vmem>>, vector<1x2048xf32>
    tpu.vector_store %arg2[%c0_1, %c0_2], %1 {strides = array<i32>} : memref<1x2048xf32, #tpu.memory_space<vmem>>, vector<1x2048xf32>,
    return
  }
  func.func @transform_0(%arg0: i32) -> (i32, i32) {
    %c0_i32 = arith.constant 0 : i32
    %c0_i32_0 = arith.constant 0 : i32
    return %arg0, %c0_i32 : i32, i32
  }
  func.func @transform_1(%arg0: i32) -> (i32, i32) {
    %c0_i32 = arith.constant 0 : i32
    %c0_i32_0 = arith.constant 0 : i32
    return %arg0, %c0_i32 : i32, i32
  }
}

</mosaic_0001>

<llo_original>
// kernel: tpu_custom_call.1
$region0: #{tpu_custom_call.1}
  #allocation0 [shape = 'u32[]', space=smem, size = 0x4, offset = 0x4, fixed_abs, tag = 'smem constant byte address 0x4 - core index']
  #allocation1 [shape = 'u32[144,128]{1,0:T(1,128)}', space=vmem, size = 0x12000, scoped, tag = 'internal scratch']
  %s0 = inlined_call_operand.hbm [shape: f32[1,2048], index: 0, kind: input, shape index: {}]
  %s1 = inlined_call_operand.hbm [shape: f32[1,2048], index: 1, kind: output, shape index: {}]
  %s2 = sld [smem:[#allocation0]]
  $region18: #{tpu_custom_call.1} parent=0
    _
  %s4 = ssub.s32 1, %s2
  %s5 = scalar_select 0, %s4, %s2
  $region1: #{tpu_custom_call.1} parent=0
    #allocation2 [shape = 'u8[8192]{0}', space=vmem, size = 0x2000, scoped, tag = 'input window, operand 0, single buffered']
    #allocation3 [shape = 's32[1]{0}', space=sflag, size = 0x4, scoped, tag = 'scoped memory for tpu_custom_call.1']
    #allocation4 [shape = 's32[1]{0}', space=sflag, size = 0x4, scoped, tag = 'scoped memory for tpu_custom_call.1']
    #allocation5 [shape = 'u8[8192]{0}', space=vmem, size = 0x2000, scoped, tag = 'output window, operand 0, single buffered']
    %6 = vsyncpa [#allocation3], 0
    %7 = vsyncpa [#allocation4], 0
    // Predicated region
    $region2: #{tpu_custom_call.1} parent=1 // pred_check
      _
    $region3: #{tpu_custom_call.1} parent=1 // pred_check_branch
      %9 = sbr.rel (0) target = $region5
    $region4: #{tpu_custom_call.1} parent=1 // pred_region
      %s11 = ssub.s32 256, 256
      %12 = vsyncadd [#allocation3], %s11
      %s14 = sshll.u32 [#allocation2], 4
      %s15 = int_to_ptr.vmem [resolvable:$true] %s14
      %17 = dma.hbm_to_vmem [thread:$0]  %s0, 256, %s15, [#allocation3]
    $region5: #{tpu_custom_call.1} parent=1 // pred_fallthru
      _
    // Predicated region
    $region6: #{tpu_custom_call.1} parent=1 // pred_check
      _
    $region7: #{tpu_custom_call.1} parent=1 // pred_check_branch
      %19 = sbr.rel (0) target = $region9
    $region8: #{tpu_custom_call.1} parent=1 // pred_region
      %20 = dma.done [#allocation3], 256
    $region9: #{tpu_custom_call.1} parent=1 // pred_fallthru
      _
    %v21 = vld [vmem:[#allocation2] sm:$0xff]
    %v22 = vld [vmem:[#allocation2 + $0x8] sm:$0xff]
    %v23 = vadd.f32 %v21, %v21
    %v24 = vadd.f32 %v22, %v22
    %25 = vst [vmem:[#allocation5] sm:$0xff] %v23
    %26 = vst [vmem:[#allocation5 + $0x8] sm:$0xff] %v24
    // Predicated region
    $region10: #{tpu_custom_call.1} parent=1 // pred_check
      _
    $region11: #{tpu_custom_call.1} parent=1 // pred_check_branch
      %28 = sbr.rel (0) target = $region13
    $region12: #{tpu_custom_call.1} parent=1 // pred_region
      %s30 = ssub.s32 256, 256
      %31 = vsyncadd [#allocation4], %s30
      %s33 = sshll.u32 [#allocation5], 4
      %s34 = int_to_ptr.vmem [resolvable:$true] %s33
      %36 = dma.vmem_to_hbm [thread:$0]  %s34, 256, %s1, [#allocation4]
    $region13: #{tpu_custom_call.1} parent=1 // pred_fallthru
      _
    // Predicated region
    $region14: #{tpu_custom_call.1} parent=1 // pred_check
      _
    $region15: #{tpu_custom_call.1} parent=1 // pred_check_branch
      %38 = sbr.rel (0) target = $region17
    $region16: #{tpu_custom_call.1} parent=1 // pred_region
      %39 = dma.done [#allocation4], 256
    $region17: #{tpu_custom_call.1} parent=1 // pred_fallthru
      _
    %40 = vsyncpa [#allocation3], 1
    %41 = vsyncpa [#allocation4], 1

</llo_original>
